<compile_context>
chip_gen: v6e
topology: v6e:2x2x1
jax: 0.10.0
libtpu: 0.0.40
codegen_flags: <defaults>
</compile_context>

<pallas_src>
import jax
import jax.numpy as jnp
from jax.experimental import pallas as pl
from jax.experimental.pallas import tpu as pltpu


def _round_up(x, m):
    return ((x + m - 1) // m) * m


def bidecoder_kernel(ueT_ref, ieT_ref, psT_ref, w_ref, outT_ref):
    # ueT_ref : (D, TE)              edge-gathered user features, edges on lanes
    # ieT_ref : (D, TE)              edge-gathered item features, edges on lanes
    # psT_ref : (num_basis*D, D)     row block s*D:(s+1)*D holds P_s^T
    # w_ref   : (num_classes, num_basis)  combine_basis weight (PyTorch layout)
    # outT_ref: (num_classes, TE)
    D = ueT_ref.shape[0]
    nb = psT_ref.shape[0] // D

    # One fused MXU matmul for all bases: proj^T[s*D+i, e] = (u_e @ P_s)[i]
    projT = jnp.dot(psT_ref[...], ueT_ref[...],
                    preferred_element_type=jnp.float32)        # (nb*D, TE), f32 acc

    ieT = ieT_ref[...].astype(jnp.float32)                     # elementwise in f32 (v5e-safe)
    w = w_ref[...].astype(jnp.float32)                         # (nc, nb)

    out = jnp.zeros(outT_ref.shape, jnp.float32)               # (nc, TE)
    for s in range(nb):                                        # num_basis is tiny & static
        # per-edge u.P_s.v : elementwise mul + cross-sublane reduce (XLU), per-lane independent
        sr_s = jnp.sum(projT[s * D:(s + 1) * D, :] * ieT,
                       axis=0, keepdims=True)                  # (1, TE)
        # combine_basis on the VPU: out[c, e] += W[c, s] * sr_s[e]
        out = out + w[:, s:s + 1] * sr_s                       # (nc,1)*(1,TE) broadcast

    outT_ref[...] = out.astype(outT_ref.dtype)                 # lane-dense store


def bidecoder_forward(src, dst, ufeat, ifeat, Ps, W_combine, *, tile_e=4096):
    """W_combine has PyTorch Linear layout (num_classes, num_basis)."""
    E = src.shape[0]
    D = ufeat.shape[1]
    num_basis = Ps.shape[0]
    num_classes = W_combine.shape[0]

    # Clamp tile to the (128-rounded) edge count; pad E so every block is full.
    tile_e = max(128, min(tile_e, _round_up(E, 128)))
    e_pad = _round_up(E, tile_e)

    # Glue: per-edge gather, presented lane-dense (edges on the last axis).
    # Padding the *indices* (not the features) keeps the pad cheap and all rows valid.
    src_p = jnp.pad(src, (0, e_pad - E))
    dst_p = jnp.pad(dst, (0, e_pad - E))
    ueT = jnp.take(ufeat, src_p, axis=0).T                     # (D, e_pad)
    ieT = jnp.take(ifeat, dst_p, axis=0).T                     # (D, e_pad)
    # Stack transposed bases: row block s holds P_s^T  -> single fused matmul in-kernel.
    psT = jnp.transpose(Ps, (0, 2, 1)).reshape(num_basis * D, D)

    in_itemsize = jnp.dtype(ufeat.dtype).itemsize
    cost = pl.CostEstimate(
        flops=2 * e_pad * D * num_basis * D
              + e_pad * num_basis * (2 * D + 2 * num_classes),
        transcendentals=0,
        bytes_accessed=2 * e_pad * D * in_itemsize
                       + e_pad * num_classes * 4
                       + num_basis * D * D * jnp.dtype(Ps.dtype).itemsize
                       + num_classes * num_basis * 4,
    )

    grid = (e_pad // tile_e,)
    outT = pl.pallas_call(
        bidecoder_kernel,
        out_shape=jax.ShapeDtypeStruct((num_classes, e_pad), jnp.float32),
        grid_spec=pltpu.PrefetchScalarGridSpec(
            num_scalar_prefetch=0,
            grid=grid,
            in_specs=[
                pl.BlockSpec((D, tile_e), lambda i: (0, i)),
                pl.BlockSpec((D, tile_e), lambda i: (0, i)),
                pl.BlockSpec((num_basis * D, D), lambda i: (0, 0)),
                pl.BlockSpec((num_classes, num_basis), lambda i: (0, 0)),
            ],
            out_specs=pl.BlockSpec((num_classes, tile_e), lambda i: (0, i)),
        ),
        compiler_params=pltpu.CompilerParams(
            dimension_semantics=("parallel",)),
        cost_estimate=cost,
    )(ueT, ieT, psT, W_combine)

    # Back to the module's (E, num_classes) layout; drop pad rows.
    return outT[:, :E].T


def _xavier_uniform(key, shape):
    fan_in, fan_out = shape[-2], shape[-1]
    bound = (6.0 / (fan_in + fan_out)) ** 0.5
    return jax.random.uniform(key, shape, jnp.float32, -bound, bound)


def _reference(src, dst, ufeat, ifeat, Ps, W_combine):
    basis_out = []
    for s in range(Ps.shape[0]):
        uh = ufeat @ Ps[s]                                     # (Nu, D)
        sr = jnp.sum(uh[src] * ifeat[dst], axis=1, keepdims=True)
        basis_out.append(sr)
    out = jnp.concatenate(basis_out, axis=1)                   # (E, num_basis)
    return out @ W_combine.T                                   # (E, num_classes)


if __name__ == "__main__":
    # Small shapes consistent with the module.
    in_units = 32        # D
    num_classes = 5
    num_basis = 2
    n_users, n_items = 16, 24
    n_edges = 256

    key = jax.random.PRNGKey(0)
    k_p, k_w, k_u, k_i, k_s, k_d = jax.random.split(key, 6)

    # Deterministic parameter init matching __init__ / reset_parameters.
    Ps = _xavier_uniform(k_p, (num_basis, in_units, in_units))  # basis weights P_s
    W_combine = _xavier_uniform(k_w, (num_classes, num_basis))  # Linear(num_basis, num_classes), no bias

    ufeat = jax.random.normal(k_u, (n_users, in_units), jnp.float32)
    ifeat = jax.random.normal(k_i, (n_items, in_units), jnp.float32)
    src = jax.random.randint(k_s, (n_edges,), 0, n_users)       # user index per edge
    dst = jax.random.randint(k_d, (n_edges,), 0, n_items)       # item index per edge

    out = bidecoder_forward(src, dst, ufeat, ifeat, Ps, W_combine)
    jax.block_until_ready(out)

    ref = _reference(src, dst, ufeat, ifeat, Ps, W_combine)
    assert out.shape == (n_edges, num_classes)
    assert jnp.allclose(out, ref, rtol=2e-4, atol=2e-4)
    print("KERNEL_OK")
</pallas_src>

<mosaic_0001>
module attributes {stable_mosaic.version = 11 : i64} {
  func.func @bidecoder_kernel(%arg0: i32, %arg1: memref<32x256xf32, #tpu.memory_space<vmem>>, %arg2: memref<32x256xf32, #tpu.memory_space<vmem>>, %arg3: memref<64x32xf32, #tpu.memory_space<vmem>>, %arg4: memref<5x2xf32, #tpu.memory_space<vmem>>, %arg5: memref<5x256xf32, #tpu.memory_space<vmem>>) attributes {dimension_semantics = [#tpu.dimension_semantics<parallel>], iteration_bounds = array<i64: 1>, scalar_prefetch = 0 : i64, scratch_operands = 0 : i64, tpu.core_type = #tpu.core_type<tc>, window_params = [{transform_indices = @transform_0, window_bounds = array<i64: 32, 256>}, {transform_indices = @transform_1, window_bounds = array<i64: 32, 256>}, {pipeline_mode = #tpu.pipeline_mode<synchronous>, transform_indices = @transform_2, window_bounds = array<i64: 64, 32>}, {pipeline_mode = #tpu.pipeline_mode<synchronous>, transform_indices = @transform_3, window_bounds = array<i64: 5, 2>}, {transform_indices = @transform_4, window_bounds = array<i64: 5, 256>}]} {
    %c0 = arith.constant 0 : index
    %c0_0 = arith.constant 0 : index
    %0 = vector.load %arg3[%c0, %c0_0] : memref<64x32xf32, #tpu.memory_space<vmem>>, vector<64x32xf32>
    %c0_1 = arith.constant 0 : index
    %c0_2 = arith.constant 0 : index
    %1 = vector.load %arg1[%c0_1, %c0_2] : memref<32x256xf32, #tpu.memory_space<vmem>>, vector<32x256xf32>
    %cst = arith.constant dense<0.000000e+00> : vector<64x256xf32>
    %2 = tpu.matmul %0, %1, %cst {dimension_numbers = #tpu.dot_dimension_numbers<[1], [0], [0], [1], [0, 0, 1, 1], [], []>} : vector<64x32xf32>, vector<32x256xf32>, vector<64x256xf32> -> vector<64x256xf32>
    %c0_3 = arith.constant 0 : index
    %c0_4 = arith.constant 0 : index
    %3 = vector.load %arg2[%c0_3, %c0_4] : memref<32x256xf32, #tpu.memory_space<vmem>>, vector<32x256xf32>
    %c0_5 = arith.constant 0 : index
    %c0_6 = arith.constant 0 : index
    %4 = vector.load %arg4[%c0_5, %c0_6] : memref<5x2xf32, #tpu.memory_space<vmem>>, vector<5x2xf32>
    %cst_7 = arith.constant 0.000000e+00 : f32
    %5 = vector.broadcast %cst_7 : f32 to vector<5x256xf32>
    %6 = vector.extract_strided_slice %2 {offsets = [0, 0], sizes = [32, 256], strides = [1, 1]} : vector<64x256xf32> to vector<32x256xf32>
    %7 = arith.mulf %6, %3 : vector<32x256xf32>
    %cst_8 = arith.constant dense<0.000000e+00> : vector<256xf32>
    %8 = vector.multi_reduction <add>, %7, %cst_8 [0] : vector<32x256xf32> to vector<256xf32>
    %9 = vector.shape_cast %8 : vector<256xf32> to vector<1x256xf32>
    %10 = vector.extract_strided_slice %4 {offsets = [0, 0], sizes = [5, 1], strides = [1, 1]} : vector<5x2xf32> to vector<5x1xf32>
    %11 = vector.broadcast %10 : vector<5x1xf32> to vector<5x256xf32>
    %12 = vector.broadcast %9 : vector<1x256xf32> to vector<5x256xf32>
    %13 = arith.mulf %11, %12 : vector<5x256xf32>
    %14 = arith.addf %5, %13 : vector<5x256xf32>
    %15 = vector.extract_strided_slice %2 {offsets = [32, 0], sizes = [32, 256], strides = [1, 1]} : vector<64x256xf32> to vector<32x256xf32>
    %16 = arith.mulf %15, %3 : vector<32x256xf32>
    %cst_9 = arith.constant dense<0.000000e+00> : vector<256xf32>
    %17 = vector.multi_reduction <add>, %16, %cst_9 [0] : vector<32x256xf32> to vector<256xf32>
    %18 = vector.shape_cast %17 : vector<256xf32> to vector<1x256xf32>
    %19 = vector.extract_strided_slice %4 {offsets = [0, 1], sizes = [5, 1], strides = [1, 1]} : vector<5x2xf32> to vector<5x1xf32>
    %20 = vector.broadcast %19 : vector<5x1xf32> to vector<5x256xf32>
    %21 = vector.broadcast %18 : vector<1x256xf32> to vector<5x256xf32>
    %22 = arith.mulf %20, %21 : vector<5x256xf32>
    %23 = arith.addf %14, %22 : vector<5x256xf32>
    %c0_10 = arith.constant 0 : index
    %c0_11 = arith.constant 0 : index
    %24 = vector.load %arg5[%c0_10, %c0_11] : memref<5x256xf32, #tpu.memory_space<vmem>>, vector<5x256xf32>
    tpu.vector_store %arg5[%c0_10, %c0_11], %23 {strides = array<i32>} : memref<5x256xf32, #tpu.memory_space<vmem>>, vector<5x256xf32>,
    return
  }
  func.func @transform_0(%arg0: i32) -> (i32, i32) {
    %c0_i32 = arith.constant 0 : i32
    %c0_i32_0 = arith.constant 0 : i32
    return %c0_i32, %arg0 : i32, i32
  }
  func.func @transform_1(%arg0: i32) -> (i32, i32) {
    %c0_i32 = arith.constant 0 : i32
    %c0_i32_0 = arith.constant 0 : i32
    return %c0_i32, %arg0 : i32, i32
  }
  func.func @transform_2(%arg0: i32) -> (i32, i32) {
    %c0_i32 = arith.constant 0 : i32
    %c0_i32_0 = arith.constant 0 : i32
    %c0_i32_1 = arith.constant 0 : i32
    return %c0_i32, %c0_i32_0 : i32, i32
  }
  func.func @transform_3(%arg0: i32) -> (i32, i32) {
    %c0_i32 = arith.constant 0 : i32
    %c0_i32_0 = arith.constant 0 : i32
    %c0_i32_1 = arith.constant 0 : i32
    return %c0_i32, %c0_i32_0 : i32, i32
  }
  func.func @transform_4(%arg0: i32) -> (i32, i32) {
    %c0_i32 = arith.constant 0 : i32
    %c0_i32_0 = arith.constant 0 : i32
    return %c0_i32, %arg0 : i32, i32
  }
}

</mosaic_0001>

<llo_original>
// kernel: tpu_custom_call.1
$region0: #{tpu_custom_call.1}
  #allocation0 [shape = 'u32[]', space=smem, size = 0x4, offset = 0x4, fixed_abs, tag = 'smem constant byte address 0x4 - core index']
  #allocation1 [shape = 'u32[144,128]{1,0:T(1,128)}', space=vmem, size = 0x12000, scoped, tag = 'internal scratch']
  %s0 = inlined_call_operand.vmem [shape: f32[32,256], index: 0, kind: input, shape index: {}]
  %s1 = inlined_call_operand.hbm [shape: f32[32,256], index: 1, kind: input, shape index: {}]
  %s2 = inlined_call_operand.vmem [shape: f32[64,32], index: 2, kind: input, shape index: {}]
  %s3 = inlined_call_operand.vmem [shape: f32[5,2], index: 3, kind: input, shape index: {}]
  %s4 = inlined_call_operand.hbm [shape: f32[5,256], index: 4, kind: output, shape index: {}]
  %s5 = sld [smem:[#allocation0]]
  $region30: #{tpu_custom_call.1} parent=0
    _
  %s7 = ssub.s32 1, %s5
  %s8 = scalar_select 0, %s7, %s5
  $region1: #{tpu_custom_call.1} parent=0
    #allocation2 [shape = 'u8[32768]{0}', space=vmem, size = 0x8000, scoped, tag = 'input window, operand 1, single buffered']
    #allocation3 [shape = 's32[1]{0}', space=sflag, size = 0x4, scoped, tag = 'scoped memory for tpu_custom_call.1']
    #allocation4 [shape = 's32[1]{0}', space=sflag, size = 0x4, scoped, tag = 'scoped memory for tpu_custom_call.1']
    #allocation5 [shape = 'u8[8192]{0}', space=vmem, size = 0x2000, scoped, tag = 'output window, operand 0, single buffered']
    %9 = vsyncpa [#allocation3], 0
    %10 = vsyncpa [#allocation4], 0
    // Predicated region
    $region2: #{tpu_custom_call.1} parent=1 // pred_check
      _
    $region3: #{tpu_custom_call.1} parent=1 // pred_check_branch
      %12 = sbr.rel (0) target = $region5
    $region4: #{tpu_custom_call.1} parent=1 // pred_region
      _
    $region5: #{tpu_custom_call.1} parent=1 // pred_fallthru
      _
    // Predicated region
    $region6: #{tpu_custom_call.1} parent=1 // pred_check
      _
    $region7: #{tpu_custom_call.1} parent=1 // pred_check_branch
      %14 = sbr.rel (0) target = $region9
    $region8: #{tpu_custom_call.1} parent=1 // pred_region
      %s16 = ssub.s32 1024, 1024
      %17 = vsyncadd [#allocation3], %s16
      %s18 = sshll.u32 [#allocation2], 4
      %s19 = int_to_ptr.vmem [resolvable:$true] %s18
      %24 = dma.hbm_to_vmem [thread:$0]  %s1, 1024, %s19, [#allocation3], 256, 256, 16
    $region9: #{tpu_custom_call.1} parent=1 // pred_fallthru
      _
    // Predicated region
    $region10: #{tpu_custom_call.1} parent=1 // pred_check
      _
    $region11: #{tpu_custom_call.1} parent=1 // pred_check_branch
      %26 = sbr.rel (0) target = $region13
    $region12: #{tpu_custom_call.1} parent=1 // pred_region
      _
    $region13: #{tpu_custom_call.1} parent=1 // pred_fallthru
      _
    // Predicated region
    $region14: #{tpu_custom_call.1} parent=1 // pred_check
      _
    $region15: #{tpu_custom_call.1} parent=1 // pred_check_branch
      %28 = sbr.rel (0) target = $region17
    $region16: #{tpu_custom_call.1} parent=1 // pred_region
      _
    $region17: #{tpu_custom_call.1} parent=1 // pred_fallthru
      _
    // Predicated region
    $region18: #{tpu_custom_call.1} parent=1 // pred_check
      _
    $region19: #{tpu_custom_call.1} parent=1 // pred_check_branch
      %30 = sbr.rel (0) target = $region21
    $region20: #{tpu_custom_call.1} parent=1 // pred_region
      %31 = dma.done [#allocation3], 1024
    $region21: #{tpu_custom_call.1} parent=1 // pred_fallthru
      _
    %v32 = vld [vmem:[%s2] sm:$0xff]
    %v33 = vld [vmem:[%s2 + $0x8] sm:$0xff]
    %v34 = vld [vmem:[%s2 + $0x10] sm:$0xff]
    %v35 = vld [vmem:[%s2 + $0x18] sm:$0xff]
    %v36 = vld [vmem:[%s2 + $0x20] sm:$0xff]
    %v37 = vld [vmem:[%s2 + $0x28] sm:$0xff]
    %v38 = vld [vmem:[%s2 + $0x30] sm:$0xff]
    %v39 = vld [vmem:[%s2 + $0x38] sm:$0xff]
    %v40 = vld [vmem:[%s0] sm:$0xff]
    %v41 = vld [vmem:[%s0 + $0x8] sm:$0xff]
    %v42 = vld [vmem:[%s0 + $0x10] sm:$0xff]
    %v43 = vld [vmem:[%s0 + $0x18] sm:$0xff]
    %v44 = vld [vmem:[%s0 + $0x20] sm:$0xff]
    %v45 = vld [vmem:[%s0 + $0x28] sm:$0xff]
    %v46 = vld [vmem:[%s0 + $0x30] sm:$0xff]
    %v47 = vld [vmem:[%s0 + $0x38] sm:$0xff]
    %vm48 = vcmask 261120
    %v50 = vsel %vm48, %v32, 0
    %v53 = vsel %vm48, %v33, 0
    %v56 = vsel %vm48, %v34, 0
    %v59 = vsel %vm48, %v35, 0
    %v62 = vsel %vm48, %v36, 0
    %v65 = vsel %vm48, %v37, 0
    %v68 = vsel %vm48, %v38, 0
    %v71 = vsel %vm48, %v39, 0
    %73 = vmatprep.subr.mxu0 0.0
    %74 = vmatpush1.msra.mxu0 0.0
    %75 = vmatprep.subr.mxu0 0.0
    %76 = vmatpush1.msra.mxu0 0.0
    %77 = vmatprep.subr.mxu0 0.0
    %78 = vmatpush1.msra.mxu0 0.0
    %79 = vmatprep.subr.mxu0 0.0
    %80 = vmatpush1.msra.mxu0 0.0
    %81 = vmatprep.subr.mxu0 0.0
    %82 = vmatpush1.msra.mxu0 0.0
    %83 = vmatprep.subr.mxu0 0.0
    %84 = vmatpush1.msra.mxu0 0.0
    %85 = vmatprep.subr.mxu0 0.0
    %86 = vmatpush1.msra.mxu0 0.0
    %87 = vmatprep.subr.mxu0 0.0
    %88 = vmatpush1.msra.mxu0 0.0
    %89 = vmatprep.subr.mxu0 0.0
    %90 = vmatpush1.msra.mxu0 0.0
    %91 = vmatprep.subr.mxu0 0.0
    %92 = vmatpush1.msra.mxu0 0.0
    %93 = vmatprep.subr.mxu0 0.0
    %94 = vmatpush1.msra.mxu0 0.0
    %95 = vmatprep.subr.mxu0 0.0
    %96 = vmatpush1.msra.mxu0 0.0
    %97 = vmatprep.subr.mxu0 %v47
    %98 = vmatpush1.msra.mxu0 %v46
    %99 = vmatprep.subr.mxu0 %v45
    %100 = vmatpush1.msra.mxu0 %v44
    %101 = vmatprep.subr.mxu0 %v43
    %102 = vmatpush1.msra.mxu0 %v42
    %103 = vmatprep.subr.mxu0 %v41
    %104 = vmatpush1.msra.mxu0 %v40
    %105 = vmatprep.subr.mxu0 0.0
    %106 = vmatpush2.msra.mxu0 0.0
    %107 = vmatprep.subr.mxu0 0.0
    %108 = vmatpush2.msra.mxu0 0.0
    %109 = vmatprep.subr.mxu0 0.0
    %110 = vmatpush2.msra.mxu0 0.0
    %111 = vmatprep.subr.mxu0 0.0
    %112 = vmatpush2.msra.mxu0 0.0
    %113 = vmatprep.subr.mxu0 0.0
    %114 = vmatpush2.msra.mxu0 0.0
    %115 = vmatprep.subr.mxu0 0.0
    %116 = vmatpush2.msra.mxu0 0.0
    %117 = vmatprep.subr.mxu0 0.0
    %118 = vmatpush2.msra.mxu0 0.0
    %119 = vmatprep.subr.mxu0 0.0
    %120 = vmatpush2.msra.mxu0 0.0
    %121 = vmatprep.subr.mxu0 0.0
    %122 = vmatpush2.msra.mxu0 0.0
    %123 = vmatprep.subr.mxu0 0.0
    %124 = vmatpush2.msra.mxu0 0.0
    %125 = vmatprep.subr.mxu0 0.0
    %126 = vmatpush2.msra.mxu0 0.0
    %127 = vmatprep.subr.mxu0 0.0
    %128 = vmatpush2.msra.mxu0 0.0
    %129 = vmatprep.subr.mxu0 0.0
    %130 = vmatpush2.msra.mxu0 0.0
    %131 = vmatprep.subr.mxu0 0.0
    %132 = vmatpush2.msra.mxu0 0.0
    %133 = vmatprep.subr.mxu0 0.0
    %134 = vmatpush2.msra.mxu0 0.0
    %135 = vmatprep.subr.mxu0 0.0
    %136 = vmatpush2.msra.mxu0 0.0
    %137 = vmatprep.mubr.f32.mxu0 0.0
    %138 = vmatmul.mubr.f32.gmra.mxu0 %v50
    %v139 = vpop.f32.mrf.mxu0
    %v140 = vadd.f32 0.0, %v139
    %v141 = vpop.f32.mrf.mxu0
    %v142 = vadd.f32 0.0, %v141
    %143 = vmatprep.mubr.f32.mxu0 0.0
    %144 = vmatmul.mubr.f32.gmra.mxu0 %v53
    %v145 = vpop.f32.mrf.mxu0
    %v146 = vadd.f32 0.0, %v145
    %v147 = vpop.f32.mrf.mxu0
    %v148 = vadd.f32 0.0, %v147
    %149 = vmatprep.mubr.f32.mxu0 0.0
    %150 = vmatmul.mubr.f32.gmra.mxu0 %v56
    %v151 = vpop.f32.mrf.mxu0
    %v152 = vadd.f32 0.0, %v151
    %v153 = vpop.f32.mrf.mxu0
    %v154 = vadd.f32 0.0, %v153
    %155 = vmatprep.mubr.f32.mxu0 0.0
    %156 = vmatmul.mubr.f32.gmra.mxu0 %v59
    %v157 = vpop.f32.mrf.mxu0
    %v158 = vadd.f32 0.0, %v157
    %v159 = vpop.f32.mrf.mxu0
    %v160 = vadd.f32 0.0, %v159
    %161 = vmatprep.mubr.f32.mxu0 0.0
    %162 = vmatmul.mubr.f32.gmra.mxu0 %v62
    %v163 = vpop.f32.mrf.mxu0
    %v164 = vadd.f32 0.0, %v163
    %v165 = vpop.f32.mrf.mxu0
    %v166 = vadd.f32 0.0, %v165
    %167 = vmatprep.mubr.f32.mxu0 0.0
    %168 = vmatmul.mubr.f32.gmra.mxu0 %v65
    %v169 = vpop.f32.mrf.mxu0
    %v170 = vadd.f32 0.0, %v169
    %v171 = vpop.f32.mrf.mxu0
    %v172 = vadd.f32 0.0, %v171
    %173 = vmatprep.mubr.f32.mxu0 0.0
    %174 = vmatmul.mubr.f32.gmra.mxu0 %v68
    %v175 = vpop.f32.mrf.mxu0
    %v176 = vadd.f32 0.0, %v175
    %v177 = vpop.f32.mrf.mxu0
    %v178 = vadd.f32 0.0, %v177
    %179 = vmatprep.mubr.f32.mxu0 0.0
    %180 = vmatmul.mubr.f32.gmra.mxu0 %v71
    %v181 = vpop.f32.mrf.mxu0
    %v182 = vadd.f32 0.0, %v181
    %v183 = vpop.f32.mrf.mxu0
    %v184 = vadd.f32 0.0, %v183
    %185 = vdwg.mxu0
    %v186 = vld [vmem:[#allocation2] sm:$0xff]
    %v187 = vld [vmem:[#allocation2 + $0x8] sm:$0xff]
    %v188 = vld [vmem:[#allocation2 + $0x10] sm:$0xff]
    %v189 = vld [vmem:[#allocation2 + $0x18] sm:$0xff]
    %v190 = vld [vmem:[#allocation2 + $0x20] sm:$0xff]
    %v191 = vld [vmem:[#allocation2 + $0x28] sm:$0xff]
    %v192 = vld [vmem:[#allocation2 + $0x30] sm:$0xff]
    %v193 = vld [vmem:[#allocation2 + $0x38] sm:$0xff]
    %v194 = vld [vmem:[%s3] sm:$0x1f]
    %v195 = vmul.f32 %v140, %v186
    %v196 = vmul.f32 %v142, %v187
    %v197 = vmul.f32 %v146, %v188
    %v198 = vmul.f32 %v148, %v189
    %v199 = vmul.f32 %v152, %v190
    %v200 = vmul.f32 %v154, %v191
    %v201 = vmul.f32 %v158, %v192
    %v202 = vmul.f32 %v160, %v193
    %v203 = vadd.f32 %v195, %v197
    %v204 = vadd.f32 %v203, %v199
    %v205 = vadd.f32 %v204, %v201
    %v206 = vrot.slane %v205, 4
    %v207 = vadd.f32 %v205, %v206
    %v208 = vrot.slane %v207, 2
    %v209 = vadd.f32 %v207, %v208
    %v210 = vrot.slane %v209, 1
    %v211 = vadd.f32 %v209, %v210
    %v212 = vadd.f32 %v196, %v198
    %v213 = vadd.f32 %v212, %v200
    %v214 = vadd.f32 %v213, %v202
    %v215 = vrot.slane %v214, 4
    %v216 = vadd.f32 %v214, %v215
    %v217 = vrot.slane %v216, 2
    %v218 = vadd.f32 %v216, %v217
    %v219 = vrot.slane %v218, 1
    %v220 = vadd.f32 %v218, %v219
    %222 = vset.pattern.permute.xlu0 0
    %223 = vperm.xlu0 %222, %v194
    %v224 = vpop.permute.xlu0 %223
    %v226 = vmul.f32 %v224, %v211
    %v227 = vmul.f32 %v224, %v220
    %v228 = vadd.f32 %v226, 0.0
    %v229 = vadd.f32 %v227, 0.0
    %v230 = vmul.f32 %v164, %v186
    %v231 = vmul.f32 %v166, %v187
    %v232 = vmul.f32 %v170, %v188
    %v233 = vmul.f32 %v172, %v189
    %v234 = vmul.f32 %v176, %v190
    %v235 = vmul.f32 %v178, %v191
    %v236 = vmul.f32 %v182, %v192
    %v237 = vmul.f32 %v184, %v193
    %v238 = vadd.f32 %v230, %v232
    %v239 = vadd.f32 %v238, %v234
    %v240 = vadd.f32 %v239, %v236
    %v241 = vrot.slane %v240, 4
    %v242 = vadd.f32 %v240, %v241
    %v243 = vrot.slane %v242, 2
    %v244 = vadd.f32 %v242, %v243
    %v245 = vrot.slane %v244, 1
    %v246 = vadd.f32 %v244, %v245
    %v247 = vadd.f32 %v231, %v233
    %v248 = vadd.f32 %v247, %v235
    %v249 = vadd.f32 %v248, %v237
    %v250 = vrot.slane %v249, 4
    %v251 = vadd.f32 %v249, %v250
    %v252 = vrot.slane %v251, 2
    %v253 = vadd.f32 %v251, %v252
    %v254 = vrot.slane %v253, 1
    %v255 = vadd.f32 %v253, %v254
    %256 = vset.pattern.permute.xlu0 1
    %257 = vperm.xlu0 %256, %v194
    %v258 = vpop.permute.xlu0 %257
    %v260 = vmul.f32 %v258, %v246
    %v261 = vmul.f32 %v258, %v255
    %v262 = vadd.f32 %v228, %v260
    %v263 = vadd.f32 %v229, %v261
    %264 = vst [vmem:[#allocation5] sm:$0x1f] %v262
    %265 = vst [vmem:[#allocation5 + $0x8] sm:$0x1f] %v263
    // Predicated region
    $region22: #{tpu_custom_call.1} parent=1 // pred_check
      _
    $region23: #{tpu_custom_call.1} parent=1 // pred_check_branch
      %267 = sbr.rel (0) target = $region25
    $region24: #{tpu_custom_call.1} parent=1 // pred_region
      %s269 = ssub.s32 256, 256
      %270 = vsyncadd [#allocation4], %s269
      %s272 = sshll.u32 [#allocation5], 4
      %s273 = int_to_ptr.vmem [resolvable:$true] %s272
      %275 = dma.vmem_to_hbm [thread:$0]  %s273, 256, %s4, [#allocation4]
    $region25: #{tpu_custom_call.1} parent=1 // pred_fallthru
      _
    // Predicated region
    $region26: #{tpu_custom_call.1} parent=1 // pred_check
      _
    $region27: #{tpu_custom_call.1} parent=1 // pred_check_branch
      %277 = sbr.rel (0) target = $region29
    $region28: #{tpu_custom_call.1} parent=1 // pred_region
      %278 = dma.done [#allocation4], 256
    $region29: #{tpu_custom_call.1} parent=1 // pred_fallthru
      _
    %279 = vsyncpa [#allocation3], 1
    %280 = vsyncpa [#allocation4], 1

</llo_original>
